<compile_context>
chip_gen: v7x
topology: tpu7x:2x2x1
jax: 0.10.0
libtpu: 0.0.40
codegen_flags: <defaults>
</compile_context>

<pallas_src>
import functools
import math

import jax
import jax.numpy as jnp
from jax.experimental import pallas as pl
from jax.experimental.pallas import tpu as pltpu

_EPS = 1e-5  # torch.nn.LayerNorm default


# ----------------------------- kernels ------------------------------------ #

def _ln_kernel(x_ref, g_ref, b_ref, o_ref):
    """o = LayerNorm(x) over the last axis, affine gamma/beta."""
    x = x_ref[...].astype(jnp.float32)
    inv_d = jnp.float32(1.0 / x_ref.shape[-1])            # hoisted constant
    mean = jnp.sum(x, axis=-1, keepdims=True) * inv_d
    mean_sq = jnp.sum(x * x, axis=-1, keepdims=True) * inv_d
    var = jnp.maximum(mean_sq - mean * mean, 0.0)          # clamp: no rsqrt NaN
    xhat = (x - mean) * jax.lax.rsqrt(var + _EPS)
    g = g_ref[...]                                          # single (1, D) read
    b = b_ref[...]
    o_ref[...] = (xhat * g + b).astype(o_ref.dtype)


def _add_ln_kernel(x_ref, s_ref, g_ref, b_ref, o_ref):
    """o = LayerNorm(x + s) over the last axis (post-norm path, fused add)."""
    y = x_ref[...].astype(jnp.float32) + s_ref[...].astype(jnp.float32)
    inv_d = jnp.float32(1.0 / x_ref.shape[-1])
    mean = jnp.sum(y, axis=-1, keepdims=True) * inv_d
    mean_sq = jnp.sum(y * y, axis=-1, keepdims=True) * inv_d
    var = jnp.maximum(mean_sq - mean * mean, 0.0)
    yhat = (y - mean) * jax.lax.rsqrt(var + _EPS)
    g = g_ref[...]
    b = b_ref[...]
    o_ref[...] = (yhat * g + b).astype(o_ref.dtype)


# ----------------------------- tiling helpers ------------------------------ #

def _cdiv(a: int, b: int) -> int:
    return -(-a // b)


def _rup(v: int, m: int) -> int:
    return _cdiv(v, m) * m


@functools.lru_cache(maxsize=None)
def _hw_params():
    """(n_tensorcores, vmem_limit_bytes, buffer_budget_bytes) for this chip."""
    vmem = 128 * 1024 * 1024
    try:
        vmem = int(pltpu.get_tpu_info().vmem_capacity_bytes)
    except Exception:
        pass  # fall back to conservative defaults
    if vmem <= 64 * 1024 * 1024:
        # v7x: 64 MiB VMEM per TensorCore, 2 TensorCores per chip.
        n_cores, vmem_limit = 2, 32 * 1024 * 1024
    else:
        # v5e / v6e: 128 MiB VMEM, 1 TensorCore.
        n_cores, vmem_limit = 1, 96 * 1024 * 1024
    buf_budget = (vmem_limit * 3) // 4          # headroom for compiler scratch
    return n_cores, vmem_limit, buf_budget


def _choose_row_tile(rows: int, d: int, itemsize: int, n_streams: int,
                     n_cores: int, buf_budget: int) -> int:
    """Row tile: sublane-aligned, VMEM-budgeted (double-buffered DMA blocks at
    their true dtype width + ~3 f32 temporaries), >=512 KiB streamed per step
    when rows allow, with a generation-aware grid-step target."""
    sublane = {1: 32, 2: 16}.get(itemsize, 8)

    # Per tile-row: n_streams double-buffered DMA blocks + f32 working set.
    bytes_per_row = n_streams * 2 * d * itemsize + 3 * d * 4
    vmem_rows = max(sublane, (buf_budget // bytes_per_row) // sublane * sublane)

    tile = min(2048, vmem_rows, _rup(rows, sublane))
    tile = max(sublane, (tile // sublane) * sublane)

    # Never shrink a step below ~512 KiB of streamed input data.
    floor_rows = min(tile, _rup(max(sublane, (512 * 1024) // max(1, d * itemsize)),
                                sublane))

    # Step target: single-TC chips only need a couple of steps for pipelining;
    # v7x (2 TCs) wants ~2 * pipeline-depth * 2 steps for megacore balance.
    min_steps = 8 if n_cores > 1 else 2
    if rows // tile < min_steps:
        want = _rup(_cdiv(rows, min_steps), sublane)
        tile = max(min(tile, want), floor_rows)

    # v7x: keep the step count even so both TensorCores get equal work.
    if n_cores > 1:
        steps = _cdiv(rows, tile)
        if steps > 1 and steps % 2 == 1:
            tile = max(sublane, _rup(_cdiv(rows, steps + 1), sublane))

    return max(sublane, tile)


def _ln_specs(tile: int, d: int):
    # D equals the full last dim of the array, so any D is legal; D % 128 == 0
    # keeps the output stores lane-dense (unmasked vst) -- the fast path.
    row_spec = pl.BlockSpec((tile, d), lambda i: (i, 0))
    vec_spec = pl.BlockSpec((1, d), lambda i: (0, 0))
    return row_spec, vec_spec


# ----------------------------- wrappers ------------------------------------ #

@functools.partial(jax.jit, static_argnames=("row_tile",))
def layer_norm_pallas(x, gamma, beta, *, row_tile=None):
    """y = LayerNorm(x) over the last axis (Pallas)."""
    d = x.shape[-1]
    rows = math.prod(x.shape[:-1])                 # static Python int
    n_cores, vmem_limit, buf_budget = _hw_params()
    tile = row_tile or _choose_row_tile(rows, d, jnp.dtype(x.dtype).itemsize,
                                        2, n_cores, buf_budget)
    row_spec, vec_spec = _ln_specs(tile, d)
    out = pl.pallas_call(
        _ln_kernel,
        out_shape=jax.ShapeDtypeStruct((rows, d), x.dtype),
        grid=(_cdiv(rows, tile),),                 # ragged last block: masked stores
        in_specs=[row_spec, vec_spec, vec_spec],
        out_specs=row_spec,
        compiler_params=pltpu.CompilerParams(
            dimension_semantics=("parallel",),
            vmem_limit_bytes=vmem_limit),
    )(x.reshape(rows, d),
      gamma.reshape(1, d).astype(jnp.float32),
      beta.reshape(1, d).astype(jnp.float32))
    return out.reshape(x.shape)


@functools.partial(jax.jit, static_argnames=("row_tile",))
def add_layer_norm_pallas(x, s, gamma, beta, *, row_tile=None):
    """y = LayerNorm(x + s) over the last axis (Pallas, fused residual add)."""
    d = x.shape[-1]
    rows = math.prod(x.shape[:-1])
    n_cores, vmem_limit, buf_budget = _hw_params()
    tile = row_tile or _choose_row_tile(rows, d, jnp.dtype(x.dtype).itemsize,
                                        3, n_cores, buf_budget)
    row_spec, vec_spec = _ln_specs(tile, d)
    out = pl.pallas_call(
        _add_ln_kernel,
        out_shape=jax.ShapeDtypeStruct((rows, d), x.dtype),
        grid=(_cdiv(rows, tile),),
        in_specs=[row_spec, row_spec, vec_spec, vec_spec],
        out_specs=row_spec,
        compiler_params=pltpu.CompilerParams(
            dimension_semantics=("parallel",),
            vmem_limit_bytes=vmem_limit),
    )(x.reshape(rows, d), s.reshape(rows, d),
      gamma.reshape(1, d).astype(jnp.float32),
      beta.reshape(1, d).astype(jnp.float32))
    return out.reshape(x.shape)


class SublayerConnectionPallas:
    """Pallas port of SublayerConnection.

    pre-norm  (post_norm=False): out = x + sublayer(LN(x))
    post-norm (post_norm=True) : out = LN(x + sublayer(x))   (add fused into LN)
    """

    def __init__(self, embed_dim: int, post_norm: bool = False):
        self.embed_dim = embed_dim
        self.post_norm = post_norm
        # nn.LayerNorm default init: weight=1, bias=0 (deterministic).
        self.gamma = jnp.ones((embed_dim,), jnp.float32)
        self.beta = jnp.zeros((embed_dim,), jnp.float32)

    def __call__(self, x, sublayer):
        if self.post_norm:
            s = sublayer(x)                       # arbitrary sublayer (JAX glue)
            return add_layer_norm_pallas(x, s, self.gamma, self.beta)
        # TODO(synk): if the sublayer is itself a Pallas matmul/attention kernel,
        # fuse this LN into its LHS-load prologue so LN(x) never round-trips HBM.
        nx = layer_norm_pallas(x, self.gamma, self.beta)
        s = sublayer(nx)                          # arbitrary sublayer (JAX glue)
        # Plain-JAX residual add: XLA fuses it into the sublayer's epilogue
        # instead of paying an extra HBM round trip for a dedicated add kernel.
        return x + s


# ----------------------------- reference ----------------------------------- #

def _ln_ref(x, gamma, beta):
    mean = jnp.mean(x, axis=-1, keepdims=True)
    var = jnp.mean(jnp.square(x - mean), axis=-1, keepdims=True)
    return (x - mean) / jnp.sqrt(var + _EPS) * gamma + beta


if __name__ == "__main__":
    key = jax.random.PRNGKey(0)
    kx, kw, kb, ky, ks = jax.random.split(key, 5)

    D = 128  # lane-dense last dim (fast store path)
    ok = True

    # 1) Full SublayerConnection forward, pre-norm and post-norm.
    B, N = 2, 8
    x = jax.random.normal(kx, (B, N, D), dtype=jnp.float32)
    W = jax.random.normal(kw, (D, D), dtype=jnp.float32) * 0.05
    bvec = jax.random.normal(kb, (D,), dtype=jnp.float32) * 0.05
    sublayer = lambda t: t @ W + bvec

    for post_norm in (False, True):
        mod = SublayerConnectionPallas(D, post_norm=post_norm)
        out = jax.block_until_ready(mod(x, sublayer))
        if post_norm:
            ref = _ln_ref(x + sublayer(x), mod.gamma, mod.beta)
        else:
            ref = x + sublayer(_ln_ref(x, mod.gamma, mod.beta))
        ok &= bool(jnp.allclose(out, ref, atol=1e-4, rtol=1e-4))
        ok &= out.shape == x.shape and out.dtype == x.dtype

    # 2) Ragged-grid validation: 21 rows with a forced 8-row tile -> grid=3,
    #    last block partially out of bounds; masked stores must match reference.
    g = jnp.ones((D,), jnp.float32)
    b0 = jnp.zeros((D,), jnp.float32)
    x_r = jax.random.normal(ky, (3, 7, D), dtype=jnp.float32)
    s_r = jax.random.normal(ks, (3, 7, D), dtype=jnp.float32)

    out_r = jax.block_until_ready(layer_norm_pallas(x_r, g, b0, row_tile=8))
    ok &= bool(jnp.allclose(out_r, _ln_ref(x_r, g, b0), atol=1e-4, rtol=1e-4))

    out_ar = jax.block_until_ready(
        add_layer_norm_pallas(x_r, s_r, g, b0, row_tile=8))
    ok &= bool(jnp.allclose(out_ar, _ln_ref(x_r + s_r, g, b0),
                            atol=1e-4, rtol=1e-4))

    if ok:
        print("KERNEL_OK")
    else:
        print("KERNEL_MISMATCH")
</pallas_src>

<mosaic_0001>
module attributes {stable_mosaic.version = 11 : i64} {
  func.func @_ln_kernel(%arg0: i32, %arg1: memref<16x128xf32, #tpu.memory_space<vmem>>, %arg2: memref<1x128xf32, #tpu.memory_space<vmem>>, %arg3: memref<1x128xf32, #tpu.memory_space<vmem>>, %arg4: memref<16x128xf32, #tpu.memory_space<vmem>>) attributes {dimension_semantics = [#tpu.dimension_semantics<parallel>], iteration_bounds = array<i64: 1>, scalar_prefetch = 0 : i64, scratch_operands = 0 : i64, tpu.core_type = #tpu.core_type<tc>, window_params = [{transform_indices = @transform_0, window_bounds = array<i64: 16, 128>}, {pipeline_mode = #tpu.pipeline_mode<synchronous>, transform_indices = @transform_1, window_bounds = array<i64: 1, 128>}, {pipeline_mode = #tpu.pipeline_mode<synchronous>, transform_indices = @transform_2, window_bounds = array<i64: 1, 128>}, {transform_indices = @transform_3, window_bounds = array<i64: 16, 128>}]} {
    %c0 = arith.constant 0 : index
    %c0_0 = arith.constant 0 : index
    %0 = vector.load %arg1[%c0, %c0_0] : memref<16x128xf32, #tpu.memory_space<vmem>>, vector<16x128xf32>
    %cst = arith.constant dense<0.000000e+00> : vector<16xf32>
    %1 = vector.multi_reduction <add>, %0, %cst [1] : vector<16x128xf32> to vector<16xf32>
    %2 = vector.shape_cast %1 : vector<16xf32> to vector<16x1xf32>
    %cst_1 = arith.constant 7.812500e-03 : f32
    %3 = vector.broadcast %cst_1 : f32 to vector<16x1xf32>
    %4 = arith.mulf %2, %3 : vector<16x1xf32>
    %5 = arith.mulf %0, %0 : vector<16x128xf32>
    %cst_2 = arith.constant dense<0.000000e+00> : vector<16xf32>
    %6 = vector.multi_reduction <add>, %5, %cst_2 [1] : vector<16x128xf32> to vector<16xf32>
    %7 = vector.shape_cast %6 : vector<16xf32> to vector<16x1xf32>
    %cst_3 = arith.constant 7.812500e-03 : f32
    %8 = vector.broadcast %cst_3 : f32 to vector<16x1xf32>
    %9 = arith.mulf %7, %8 : vector<16x1xf32>
    %10 = arith.mulf %4, %4 : vector<16x1xf32>
    %11 = arith.subf %9, %10 : vector<16x1xf32>
    %cst_4 = arith.constant 0.000000e+00 : f32
    %12 = vector.broadcast %cst_4 : f32 to vector<16x1xf32>
    %13 = arith.maximumf %11, %12 : vector<16x1xf32>
    %14 = vector.broadcast %4 : vector<16x1xf32> to vector<16x128xf32>
    %15 = arith.subf %0, %14 : vector<16x128xf32>
    %cst_5 = arith.constant 9.99999974E-6 : f32
    %16 = vector.broadcast %cst_5 : f32 to vector<16x1xf32>
    %17 = arith.addf %13, %16 : vector<16x1xf32>
    %18 = math.rsqrt %17 : vector<16x1xf32>
    %19 = vector.broadcast %18 : vector<16x1xf32> to vector<16x128xf32>
    %20 = arith.mulf %15, %19 : vector<16x128xf32>
    %c0_6 = arith.constant 0 : index
    %c0_7 = arith.constant 0 : index
    %21 = vector.load %arg2[%c0_6, %c0_7] : memref<1x128xf32, #tpu.memory_space<vmem>>, vector<1x128xf32>
    %c0_8 = arith.constant 0 : index
    %c0_9 = arith.constant 0 : index
    %22 = vector.load %arg3[%c0_8, %c0_9] : memref<1x128xf32, #tpu.memory_space<vmem>>, vector<1x128xf32>
    %23 = vector.broadcast %21 : vector<1x128xf32> to vector<16x128xf32>
    %24 = arith.mulf %20, %23 : vector<16x128xf32>
    %25 = vector.broadcast %22 : vector<1x128xf32> to vector<16x128xf32>
    %26 = arith.addf %24, %25 : vector<16x128xf32>
    %c0_10 = arith.constant 0 : index
    %c0_11 = arith.constant 0 : index
    %27 = vector.load %arg4[%c0_10, %c0_11] : memref<16x128xf32, #tpu.memory_space<vmem>>, vector<16x128xf32>
    tpu.vector_store %arg4[%c0_10, %c0_11], %26 {strides = array<i32>} : memref<16x128xf32, #tpu.memory_space<vmem>>, vector<16x128xf32>,
    return
  }
  func.func @transform_0(%arg0: i32) -> (i32, i32) {
    %c0_i32 = arith.constant 0 : i32
    %c0_i32_0 = arith.constant 0 : i32
    return %arg0, %c0_i32 : i32, i32
  }
  func.func @transform_1(%arg0: i32) -> (i32, i32) {
    %c0_i32 = arith.constant 0 : i32
    %c0_i32_0 = arith.constant 0 : i32
    %c0_i32_1 = arith.constant 0 : i32
    return %c0_i32, %c0_i32_0 : i32, i32
  }
  func.func @transform_2(%arg0: i32) -> (i32, i32) {
    %c0_i32 = arith.constant 0 : i32
    %c0_i32_0 = arith.constant 0 : i32
    %c0_i32_1 = arith.constant 0 : i32
    return %c0_i32, %c0_i32_0 : i32, i32
  }
  func.func @transform_3(%arg0: i32) -> (i32, i32) {
    %c0_i32 = arith.constant 0 : i32
    %c0_i32_0 = arith.constant 0 : i32
    return %arg0, %c0_i32 : i32, i32
  }
}

</mosaic_0001>

<llo_original>
// kernel: layer_norm_pallas.1
$region0: #{layer_norm_pallas.1}
  #allocation0 [shape = 'u32[]', space=smem, size = 0x4, offset = 0x4, fixed_abs, tag = 'smem constant byte address 0x4 - core index']
  #allocation1 [shape = 'u32[144,128]{1,0:T(1,128)}', space=vmem, size = 0x12000, scoped, tag = 'internal scratch']
  %s0 = inlined_call_operand.hbm [shape: f32[16,128], index: 0, kind: input, shape index: {}]
  %s1 = inlined_call_operand.hbm [shape: f32[1,128], index: 1, kind: input, shape index: {}]
  %s2 = inlined_call_operand.hbm [shape: f32[1,128], index: 2, kind: input, shape index: {}]
  %s3 = inlined_call_operand.hbm [shape: f32[16,128], index: 3, kind: output, shape index: {}]
  %s4 = sld [smem:[#allocation0]]
  $region34: #{layer_norm_pallas.1} parent=0
    _
  %s6 = ssub.s32 1, %s4
  %s7 = scalar_select 0, %s6, %s4
  $region1: #{layer_norm_pallas.1} parent=0
    #allocation2 [shape = 'u8[8192]{0}', space=vmem, size = 0x2000, scoped, tag = 'input window, operand 0, single buffered']
    #allocation3 [shape = 's32[1]{0}', space=sflag, size = 0x4, scoped, tag = 'scoped memory for layer_norm_pallas.1']
    #allocation4 [shape = 's32[1]{0}', space=sflag, size = 0x4, scoped, tag = 'scoped memory for layer_norm_pallas.1']
    #allocation5 [shape = 'u8[512]{0}', space=vmem, size = 0x400, scoped, tag = 'input window, operand 1, single buffered']
    #allocation6 [shape = 's32[1]{0}', space=sflag, size = 0x4, scoped, tag = 'scoped memory for layer_norm_pallas.1']
    #allocation7 [shape = 'u8[512]{0}', space=vmem, size = 0x400, scoped, tag = 'input window, operand 2, single buffered']
    #allocation8 [shape = 'u8[8192]{0}', space=vmem, size = 0x2000, scoped, tag = 'output window, operand 0, single buffered']
    %8 = vsyncpa [#allocation3], 0
    %9 = vsyncpa [#allocation6], 0
    %10 = vsyncpa [#allocation4], 0
    // Predicated region
    $region2: #{layer_norm_pallas.1} parent=1 // pred_check
      _
    $region3: #{layer_norm_pallas.1} parent=1 // pred_check_branch
      %12 = sbr.rel (0) target = $region5
    $region4: #{layer_norm_pallas.1} parent=1 // pred_region
      %s14 = ssub.s32 256, 256
      %15 = vsyncadd [#allocation3], %s14
      %s16 = sshll.u32 [#allocation2], 4
      %s17 = int_to_ptr.vmem [resolvable:$true] %s16
      %22 = dma.hbm_to_vmem [thread:$0]  %s0, 256, %s17, [#allocation3], 128, 128, 8
    $region5: #{layer_norm_pallas.1} parent=1 // pred_fallthru
      _
    // Predicated region
    $region6: #{layer_norm_pallas.1} parent=1 // pred_check
      _
    $region7: #{layer_norm_pallas.1} parent=1 // pred_check_branch
      %24 = sbr.rel (0) target = $region9
    $region8: #{layer_norm_pallas.1} parent=1 // pred_region
      %s26 = ssub.s32 16, 16
      %27 = vsyncadd [#allocation6], %s26
      %s29 = sshll.u32 [#allocation5], 4
      %s30 = int_to_ptr.vmem [resolvable:$true] %s29
      %32 = dma.hbm_to_vmem [thread:$0]  %s1, 16, %s30, [#allocation6]
    $region9: #{layer_norm_pallas.1} parent=1 // pred_fallthru
      _
    // Predicated region
    $region10: #{layer_norm_pallas.1} parent=1 // pred_check
      _
    $region11: #{layer_norm_pallas.1} parent=1 // pred_check_branch
      %34 = sbr.rel (0) target = $region13
    $region12: #{layer_norm_pallas.1} parent=1 // pred_region
      %s36 = ssub.s32 16, 16
      %37 = vsyncadd [#allocation6], %s36
      %s39 = sshll.u32 [#allocation7], 4
      %s40 = int_to_ptr.vmem [resolvable:$true] %s39
      %42 = dma.hbm_to_vmem [thread:$0]  %s2, 16, %s40, [#allocation6]
    $region13: #{layer_norm_pallas.1} parent=1 // pred_fallthru
      _
    // Predicated region
    $region14: #{layer_norm_pallas.1} parent=1 // pred_check
      _
    $region15: #{layer_norm_pallas.1} parent=1 // pred_check_branch
      %44 = sbr.rel (0) target = $region17
    $region16: #{layer_norm_pallas.1} parent=1 // pred_region
      %45 = dma.done [#allocation3], 256
    $region17: #{layer_norm_pallas.1} parent=1 // pred_fallthru
      _
    // Predicated region
    $region18: #{layer_norm_pallas.1} parent=1 // pred_check
      _
    $region19: #{layer_norm_pallas.1} parent=1 // pred_check_branch
      %47 = sbr.rel (0) target = $region21
    $region20: #{layer_norm_pallas.1} parent=1 // pred_region
      %48 = dma.done [#allocation6], 16
    $region21: #{layer_norm_pallas.1} parent=1 // pred_fallthru
      _
    // Predicated region
    $region22: #{layer_norm_pallas.1} parent=1 // pred_check
      _
    $region23: #{layer_norm_pallas.1} parent=1 // pred_check_branch
      %50 = sbr.rel (0) target = $region25
    $region24: #{layer_norm_pallas.1} parent=1 // pred_region
      %51 = dma.done [#allocation6], 16
    $region25: #{layer_norm_pallas.1} parent=1 // pred_fallthru
      _
    %v52 = vld [vmem:[#allocation2] sm:$0xff]
    %v53 = vld [vmem:[#allocation2 + $0x8] sm:$0xff]
    %54 = vadd.xlane.f32.xlu0 %v52
    %v55 = vpop.xlane.xlu0 %54
    %56 = vadd.xlane.f32.xlu0 %v53
    %v57 = vpop.xlane.xlu0 %56
    %v58 = vmul.f32 %v55, 0.0078125
    %v59 = vmul.f32 %v57, 0.0078125
    %v60 = vmul.f32 %v52, %v52
    %v61 = vmul.f32 %v53, %v53
    %62 = vadd.xlane.f32.xlu0 %v60
    %v63 = vpop.xlane.xlu0 %62
    %64 = vadd.xlane.f32.xlu0 %v61
    %v65 = vpop.xlane.xlu0 %64
    %v66 = vmul.f32 %v63, 0.0078125
    %v67 = vmul.f32 %v65, 0.0078125
    %v68 = vmul.f32 %v58, %v58
    %v69 = vmul.f32 %v59, %v59
    %v70 = vsub.f32 %v66, %v68
    %v71 = vsub.f32 %v67, %v69
    %v72 = vmax.f32 %v70, 0.0
    %v73 = vmax.f32 %v71, 0.0
    %v74 = vsub.f32 %v52, %v58
    %v75 = vsub.f32 %v53, %v59
    %v76 = vadd.f32 %v72, 1e-05
    %v77 = vadd.f32 %v73, 1e-05
    %v78 = vrsqrt.pop %v76
    %v79 = vrsqrt.pop %v77
    %v80 = vmul.f32 %v74, %v78
    %v81 = vmul.f32 %v75, %v79
    %v82 = vld [vmem:[#allocation5] sm:$0x1]
    %v83 = vld [vmem:[#allocation7] sm:$0x1]
    %v85 = vlaneseq
    %v86 = vshrl.u32 %v85, 7
    %v87 = vsub.s32 0, %v86
    %v88 = vrot.slane %v82, %v87
    %v90 = vmul.f32 %v80, %v88
    %v91 = vmul.f32 %v81, %v88
    %v93 = vlaneseq
    %v94 = vshrl.u32 %v93, 7
    %v95 = vsub.s32 0, %v94
    %v96 = vrot.slane %v83, %v95
    %v98 = vadd.f32 %v90, %v96
    %v99 = vadd.f32 %v91, %v96
    %100 = vst [vmem:[#allocation8] sm:$0xff] %v98
    %101 = vst [vmem:[#allocation8 + $0x8] sm:$0xff] %v99
    // Predicated region
    $region26: #{layer_norm_pallas.1} parent=1 // pred_check
      _
    $region27: #{layer_norm_pallas.1} parent=1 // pred_check_branch
      %103 = sbr.rel (0) target = $region29
    $region28: #{layer_norm_pallas.1} parent=1 // pred_region
      %s105 = ssub.s32 256, 256
      %106 = vsyncadd [#allocation4], %s105
      %s107 = sshll.u32 [#allocation8], 4
      %s108 = int_to_ptr.vmem [resolvable:$true] %s107
      %113 = dma.vmem_to_hbm [thread:$0]  %s108, 256, %s3, [#allocation4], 128, 128, 8
    $region29: #{layer_norm_pallas.1} parent=1 // pred_fallthru
      _
    // Predicated region
    $region30: #{layer_norm_pallas.1} parent=1 // pred_check
      _
    $region31: #{layer_norm_pallas.1} parent=1 // pred_check_branch
      %115 = sbr.rel (0) target = $region33
    $region32: #{layer_norm_pallas.1} parent=1 // pred_region
      %116 = dma.done [#allocation4], 256
    $region33: #{layer_norm_pallas.1} parent=1 // pred_fallthru
      _
    %117 = vsyncpa [#allocation3], 1
    %118 = vsyncpa [#allocation6], 1
    %119 = vsyncpa [#allocation4], 1

</llo_original>
